<compile_context>
chip_gen: v7x
topology: tpu7x:2x2x1
jax: 0.10.0
libtpu: 0.0.40
codegen_flags: <defaults>
</compile_context>

<pallas_src>
import functools
import math

import jax
import jax.numpy as jnp
import numpy as np
from jax.experimental import pallas as pl
from jax.experimental.pallas import tpu as pltpu


def _round_up(v, q):
    return ((v + q - 1) // q) * q


def _pick_tile(total, quantum, target):
    """Largest multiple of `quantum` that divides `total` and is <= target, else `total`."""
    best = None
    t = quantum
    cap = min(total, target)
    while t <= cap:
        if total % t == 0:
            best = t
        t += quantum
    return best if best is not None else total


def _pad_rows(a, rows, value=0.0):
    extra = rows - a.shape[0]
    if extra <= 0:
        return a
    return jnp.concatenate(
        [a, jnp.full((extra,) + a.shape[1:], value, a.dtype)], axis=0)


# ----------------------------------------------------------------------------
# Kernel 1: fused LSH hashing + theta/g projections (single stacked matmul).
#   x tile   : (1, C, T) bf16  (tokens on lanes)
#   weights  : (Rw, C) bf16 = [A*m_pad hash rows ; CoutPad theta rows ; CoutPad g rows]
#   bias     : (Rw, 1) f32
#   outputs  : hash (1, A, T) f32 ; proj (1, 2*CoutPad, T) f32 = [prod ; m1]
# ----------------------------------------------------------------------------
def _fused_hash_proj_kernel(x_ref, w_ref, b_ref, hash_ref, proj_ref,
                            *, n_attn, m_pad, cout_pad):
    xt = x_ref[0]                                                     # (C, T) bf16
    rot = jnp.dot(w_ref[...], xt, preferred_element_type=jnp.float32)  # (Rw, T) f32
    rot = rot + b_ref[...]                                            # lane-broadcast bias
    t = xt.shape[-1]
    hrows = n_attn * m_pad
    # Aligned reshape + sublane max over the m_pad projections of each head.
    hsh = jnp.max(rot[:hrows].reshape(n_attn, m_pad, t), axis=1)      # (A, T)
    hash_ref[...] = hsh.reshape(1, n_attn, t)
    m1 = rot[hrows:hrows + cout_pad]                                  # theta(x), (CoutPad, T)
    m2 = rot[hrows + cout_pad:hrows + 2 * cout_pad]                   # g(x)
    proj_ref[0, 0:cout_pad, :] = m1 * m2                              # prod rows
    proj_ref[0, cout_pad:2 * cout_pad, :] = m1                        # m1 rows


def hash_and_project(x3, w_all, b_all, *, n_attn, m_pad, cout_pad,
                     row_tile_target=2048):
    # row_tile_target can be raised (4096-8192) on v5e/v6e (128 MiB VMEM);
    # the default is kept v7x-safe (64 MiB VMEM, needs >=2 grid steps).
    n, c, hwp = x3.shape
    rw = w_all.shape[0]
    rp = 2 * cout_pad
    tile_target = row_tile_target
    if n == 1 and hwp >= 256:
        tile_target = min(tile_target, hwp // 2)   # keep >=2 grid steps (v7x megacore)
    t = _pick_tile(hwp, 128, tile_target)          # hwp is a multiple of 128 -> no fallback
    kern = functools.partial(_fused_hash_proj_kernel, n_attn=n_attn,
                             m_pad=m_pad, cout_pad=cout_pad)
    return pl.pallas_call(
        kern,
        out_shape=(jax.ShapeDtypeStruct((n, n_attn, hwp), jnp.float32),
                   jax.ShapeDtypeStruct((n, rp, hwp), jnp.float32)),
        grid=(n, hwp // t),
        in_specs=[
            pl.BlockSpec((1, c, t), lambda b, i: (b, 0, i)),
            pl.BlockSpec((rw, c), lambda b, i: (0, 0)),
            pl.BlockSpec((rw, 1), lambda b, i: (0, 0)),
        ],
        out_specs=(pl.BlockSpec((1, n_attn, t), lambda b, i: (b, 0, i)),
                   pl.BlockSpec((1, rp, t), lambda b, i: (b, 0, i))),
        compiler_params=pltpu.CompilerParams(
            dimension_semantics=("parallel", "parallel"),
            vmem_limit_bytes=48 * 1024 * 1024),
    )(x3, w_all, b_all)


# ----------------------------------------------------------------------------
# Kernel 2: per-bucket attention via a one-hot MXU matmul (no gathered
# (Cout, G, K) materialization, no HBM round trip of A-times-duplicated data).
#   bid  : (1, 1, 1, HWp) int32 bucket id per token (sentinel B for padding)
#   proj : (1, 2*CoutPad, HWp) f32 = [prod ; m1]  (read once per batch)
#   att  : (1, 1, CoutPad, TB) f32 = sum(prod)/sum(m1) per bucket
# ----------------------------------------------------------------------------
def _bucket_attn_kernel(bid_ref, proj_ref, att_ref, *, cout_pad):
    tb = att_ref.shape[-1]
    hwp = bid_ref.shape[-1]
    j = pl.program_id(2)
    bid = bid_ref[0, 0]                                               # (1, HWp) int32
    b_iota = jax.lax.broadcasted_iota(jnp.int32, (tb, hwp), 0) + j * tb
    onehot = (b_iota == bid).astype(jnp.float32)                      # (TB, HWp)
    proj = proj_ref[0]                                                # (2*CoutPad, HWp)
    # proj @ onehot^T  (contract the token axis of both) -> per-bucket sums.
    sums = jax.lax.dot_general(
        proj, onehot, dimension_numbers=(((1,), (1,)), ((), ())),
        preferred_element_type=jnp.float32)                           # (2*CoutPad, TB)
    num = sums[:cout_pad]
    den = sums[cout_pad:2 * cout_pad]
    att_ref[...] = (num * pl.reciprocal(den, approx=True)
                    ).reshape(1, 1, cout_pad, tb)


def bucket_attention(proj, bid4, n_buckets, *, cout_pad,
                     onehot_budget_bytes=4 * 1024 * 1024):
    n, rp, hwp = proj.shape
    n_attn = bid4.shape[1]
    tb_target = max(128, onehot_budget_bytes // (4 * hwp))
    tb = _pick_tile(n_buckets, 128, tb_target)   # falls back to full B only when B is small
    nj = n_buckets // tb
    kern = functools.partial(_bucket_attn_kernel, cout_pad=cout_pad)
    return pl.pallas_call(
        kern,
        out_shape=jax.ShapeDtypeStruct((n, n_attn, cout_pad, n_buckets), jnp.float32),
        grid=(n, n_attn, nj),
        in_specs=[
            pl.BlockSpec((1, 1, 1, hwp), lambda b, a, j: (b, a, 0, 0)),
            pl.BlockSpec((1, rp, hwp), lambda b, a, j: (b, 0, 0)),   # re-fetched only when b changes
        ],
        out_specs=pl.BlockSpec((1, 1, cout_pad, tb), lambda b, a, j: (b, a, 0, j)),
        compiler_params=pltpu.CompilerParams(
            dimension_semantics=("parallel", "parallel", "parallel"),
            vmem_limit_bytes=48 * 1024 * 1024),
    )(bid4, proj)


# ----------------------------------------------------------------------------
# Full forward (glue in plain JAX: reshapes, sort, inverse-permutation gather)
# ----------------------------------------------------------------------------
def nlsa_forward(x, params, n_attention, k, rng_key):
    n, c, h, w = x.shape
    hw = h * w
    if hw % k != 0:
        raise ValueError("h*w must be divisible by k")
    cout = params["theta_w"].shape[0]
    n_buckets = hw // k
    m = min(hw // k, 128)
    m_pad = _round_up(m, 8)            # pad with duplicate rows -> max unchanged
    cout_pad = _round_up(cout, 8)
    hw_pad = _round_up(hw, 128)

    # ---- Stacked bf16 weight / f32 bias for the single kernel-1 matmul ----
    rmats = jax.random.normal(rng_key, (n_attention, c, m), dtype=jnp.float32)
    rmt = jnp.transpose(rmats, (0, 2, 1))                              # (A, m, C)
    if m_pad > m:
        rmt = jnp.concatenate(
            [rmt, jnp.broadcast_to(rmt[:, :1, :], (n_attention, m_pad - m, c))],
            axis=1)
    rmt = rmt.reshape(n_attention * m_pad, c)

    # theta padding rows: weight 0, bias 1  -> padded m1 rows == 1 (no 0/0);
    # g padding rows:     weight 0, bias 0  -> padded prod rows == 0 (att_pad = 0).
    theta_w_p = _pad_rows(params["theta_w"], cout_pad, 0.0)
    theta_b_p = _pad_rows(params["theta_b"], cout_pad, 1.0)
    g_w_p = _pad_rows(params["g_w"], cout_pad, 0.0)
    g_b_p = _pad_rows(params["g_b"], cout_pad, 0.0)

    w_all = jnp.concatenate([rmt, theta_w_p, g_w_p], axis=0).astype(jnp.bfloat16)
    b_all = jnp.concatenate(
        [jnp.zeros((n_attention * m_pad,), jnp.float32), theta_b_p, g_b_p],
        axis=0)[:, None].astype(jnp.float32)

    # channels-by-tokens layout (tokens on lanes); pad tokens to a 128 multiple.
    x3 = x.reshape(n, c, hw)
    if hw_pad > hw:
        x3 = jnp.pad(x3, ((0, 0), (0, 0), (0, hw_pad - hw)))
    x3 = x3.astype(jnp.bfloat16)

    hash_full, proj = hash_and_project(
        x3, w_all, b_all, n_attn=n_attention, m_pad=m_pad, cout_pad=cout_pad)
    # hash_full: (N, A, HWp) f32 ; proj: (N, 2*CoutPad, HWp) f32 = [prod ; m1]

    hash_code = hash_full[:, :, :hw]                                   # (N, A, HW)
    # TODO(synk): descending sort has no clean Pallas TPU equivalent; done with jnp.argsort (XLA).
    sorted_index = jnp.argsort(-hash_code, axis=2)                     # (N, A, HW)
    inv = jnp.argsort(sorted_index, axis=2)                            # rank of each token
    bucket_id = (inv // k).astype(jnp.int32)                           # (N, A, HW)

    if hw_pad > hw:   # padded tokens get an out-of-range bucket -> excluded by the one-hot
        bid_full = jnp.concatenate(
            [bucket_id,
             jnp.full((n, n_attention, hw_pad - hw), n_buckets, jnp.int32)], axis=-1)
    else:
        bid_full = bucket_id
    bid4 = bid_full.reshape(n, n_attention, 1, hw_pad)

    att_full = bucket_attention(proj, bid4, n_buckets, cout_pad=cout_pad)
    att = jnp.transpose(att_full[:, :, :cout, :], (0, 1, 3, 2))        # (N, A, B, Cout)

    # Final output: inverse-permutation gather (no XLA scatter), then zero-pad
    # channels Cout..C-1, matching the reference's zeros(..., C) + scatter.
    gather_idx = jnp.broadcast_to(bucket_id[..., None], (n, n_attention, hw, cout))
    vals = jnp.take_along_axis(att, gather_idx, axis=2)                # (N, A, HW, Cout)
    if cout < c:
        vals = jnp.concatenate(
            [vals, jnp.zeros((n, n_attention, hw, c - cout), vals.dtype)], axis=-1)
    elif cout > c:
        vals = vals[..., :c]
    output = jnp.transpose(vals, (1, 0, 2, 3))                         # (A, N, HW, C)

    aux = dict(
        hash=hash_code,
        prod=proj[:, :cout, :hw],                   # (N, Cout, HW)
        m1=proj[:, cout_pad:cout_pad + cout, :hw],  # (N, Cout, HW)
        idx=sorted_index.reshape(n, n_attention, n_buckets, k),
        att=att)
    return output, aux


if __name__ == "__main__":
    key = jax.random.PRNGKey(0)
    kx, kr, k1, k2, k3, k4 = jax.random.split(key, 6)

    # Small shapes consistent with the module (batch, channels, H, W).
    N, C, H, W = 2, 4, 16, 16
    A, K, COUT = 2, 8, 3        # n_attention, bucket size k, n_channels_out

    x = jax.random.normal(kx, (N, C, H, W), dtype=jnp.float32)

    # nn.Linear-style deterministic init: U(-1/sqrt(fan_in), 1/sqrt(fan_in))
    bound = 1.0 / math.sqrt(C)
    params = dict(
        theta_w=jax.random.uniform(k1, (COUT, C), minval=-bound, maxval=bound, dtype=jnp.float32),
        theta_b=jax.random.uniform(k2, (COUT,), minval=-bound, maxval=bound, dtype=jnp.float32),
        g_w=jax.random.uniform(k3, (COUT, C), minval=-bound, maxval=bound, dtype=jnp.float32),
        g_b=jax.random.uniform(k4, (COUT,), minval=-bound, maxval=bound, dtype=jnp.float32),
    )

    fwd = jax.jit(nlsa_forward, static_argnums=(2, 3))
    output, aux = fwd(x, params, A, K, kr)
    output = jax.block_until_ready(output)

    # ------------------------- reference checks (XLA) -------------------------
    hw = H * W
    x_flat = jnp.transpose(x.reshape(N, C, hw), (0, 2, 1))              # (N, HW, C)
    xb = x_flat.astype(jnp.bfloat16)   # kernel uses bf16 operands / f32 accumulation

    # 1) hash kernel (bf16-consistent reference)
    m = min(hw // K, 128)
    rmats = jax.random.normal(kr, (A, C, m), dtype=jnp.float32)
    rot_ref = jnp.einsum("npc,acm->napm", xb, rmats.astype(jnp.bfloat16),
                         preferred_element_type=jnp.float32)
    hash_ref = jnp.max(rot_ref, axis=-1)                                # (N, A, HW)
    np.testing.assert_allclose(np.asarray(aux["hash"]), np.asarray(hash_ref),
                               rtol=2e-3, atol=2e-3)

    # 2) projection kernel
    m1_ref = jnp.einsum("npc,oc->npo", xb, params["theta_w"].astype(jnp.bfloat16),
                        preferred_element_type=jnp.float32) + params["theta_b"]
    m2_ref = jnp.einsum("npc,oc->npo", xb, params["g_w"].astype(jnp.bfloat16),
                        preferred_element_type=jnp.float32) + params["g_b"]
    m1_got = jnp.transpose(aux["m1"], (0, 2, 1))                        # (N, HW, Cout)
    prod_got = jnp.transpose(aux["prod"], (0, 2, 1))
    np.testing.assert_allclose(np.asarray(m1_got), np.asarray(m1_ref), rtol=2e-3, atol=2e-3)
    np.testing.assert_allclose(np.asarray(prod_got), np.asarray(m1_ref * m2_ref),
                               rtol=2e-3, atol=2e-3)

    # 3) bucket attention on the same bucket assignment:
    #    att[p,c] = sum_q(m1[q,c]*m2[q,c]) / sum_q(m1[q,c]) — algebraically identical
    #    to the reference's result2/theta_g/sum_att computation (p cancels).
    idx = aux["idx"]                                                    # (N, A, B, K)
    Bk = hw // K
    n_ix = jnp.arange(N)[:, None, None, None]
    g_num_ref = prod_got[n_ix, idx]                                     # (N, A, B, K, Cout)
    g_den_ref = m1_got[n_ix, idx]
    att_ref = g_num_ref.sum(3) / g_den_ref.sum(3)                       # (N, A, B, Cout)
    np.testing.assert_allclose(np.asarray(aux["att"]), np.asarray(att_ref),
                               rtol=1e-2, atol=1e-2)

    # 4) final output vs. independent scatter-based construction
    out_ref = jnp.zeros((A, N, hw, C), jnp.float32)
    vals_ref = jnp.broadcast_to(att_ref[:, :, :, None, :], (N, A, Bk, K, COUT))
    vals_ref = jnp.transpose(vals_ref, (1, 0, 2, 3, 4)).reshape(A, N, hw, COUT)
    idx_perm = jnp.transpose(idx, (1, 0, 2, 3)).reshape(A, N, hw)
    a_ix = jnp.arange(A)[:, None, None, None]
    nn_ix = jnp.arange(N)[None, :, None, None]
    c_ix = jnp.arange(COUT)[None, None, None, :]
    out_ref = out_ref.at[a_ix, nn_ix, idx_perm[..., None], c_ix].set(vals_ref)
    np.testing.assert_allclose(np.asarray(output), np.asarray(out_ref),
                               rtol=1e-2, atol=1e-2)

    assert output.shape == (A, N, hw, C)
    assert bool(jnp.isfinite(output).all())
    print("KERNEL_OK")
</pallas_src>

<mosaic_0001>
module attributes {stable_mosaic.version = 11 : i64} {
  func.func @_fused_hash_proj_kernel(%arg0: i32, %arg1: i32, %arg2: memref<1x4x256xbf16, #tpu.memory_space<vmem>>, %arg3: memref<80x4xbf16, #tpu.memory_space<vmem>>, %arg4: memref<80x1xf32, #tpu.memory_space<vmem>>, %arg5: memref<1x2x256xf32, #tpu.memory_space<vmem>>, %arg6: memref<1x16x256xf32, #tpu.memory_space<vmem>>) attributes {dimension_semantics = [#tpu.dimension_semantics<parallel>, #tpu.dimension_semantics<parallel>], iteration_bounds = array<i64: 2, 1>, scalar_prefetch = 0 : i64, scratch_operands = 0 : i64, tpu.core_type = #tpu.core_type<tc>, window_params = [{transform_indices = @transform_0, window_bounds = array<i64: 1, 4, 256>}, {pipeline_mode = #tpu.pipeline_mode<synchronous>, transform_indices = @transform_1, window_bounds = array<i64: 80, 4>}, {pipeline_mode = #tpu.pipeline_mode<synchronous>, transform_indices = @transform_2, window_bounds = array<i64: 80, 1>}, {transform_indices = @transform_3, window_bounds = array<i64: 1, 2, 256>}, {transform_indices = @transform_4, window_bounds = array<i64: 1, 16, 256>}]} {
    %c0 = arith.constant 0 : index
    %c0_0 = arith.constant 0 : index
    %c0_1 = arith.constant 0 : index
    %0 = vector.load %arg2[%c0, %c0_0, %c0_1] : memref<1x4x256xbf16, #tpu.memory_space<vmem>>, vector<1x4x256xbf16>
    %1 = vector.shape_cast %0 : vector<1x4x256xbf16> to vector<4x256xbf16>
    %c0_2 = arith.constant 0 : index
    %c0_3 = arith.constant 0 : index
    %2 = vector.load %arg3[%c0_2, %c0_3] : memref<80x4xbf16, #tpu.memory_space<vmem>>, vector<80x4xbf16>
    %cst = arith.constant dense<0.000000e+00> : vector<80x256xf32>
    %3 = tpu.matmul %2, %1, %cst {dimension_numbers = #tpu.dot_dimension_numbers<[1], [0], [0], [1], [0, 0, 1, 1], [], []>} : vector<80x4xbf16>, vector<4x256xbf16>, vector<80x256xf32> -> vector<80x256xf32>
    %c0_4 = arith.constant 0 : index
    %c0_5 = arith.constant 0 : index
    %4 = vector.load %arg4[%c0_4, %c0_5] : memref<80x1xf32, #tpu.memory_space<vmem>>, vector<80x1xf32>
    %5 = vector.broadcast %4 : vector<80x1xf32> to vector<80x256xf32>
    %6 = arith.addf %3, %5 : vector<80x256xf32>
    %7 = vector.extract_strided_slice %6 {offsets = [0, 0], sizes = [64, 256], strides = [1, 1]} : vector<80x256xf32> to vector<64x256xf32>
    %8 = vector.shape_cast %7 : vector<64x256xf32> to vector<2x32x256xf32>
    %cst_6 = arith.constant dense<0xFF800000> : vector<2x256xf32>
    %9 = vector.multi_reduction <maximumf>, %8, %cst_6 [1] : vector<2x32x256xf32> to vector<2x256xf32>
    %10 = vector.shape_cast %9 : vector<2x256xf32> to vector<1x2x256xf32>
    %c0_7 = arith.constant 0 : index
    %c0_8 = arith.constant 0 : index
    %c0_9 = arith.constant 0 : index
    %11 = vector.load %arg5[%c0_7, %c0_8, %c0_9] : memref<1x2x256xf32, #tpu.memory_space<vmem>>, vector<1x2x256xf32>
    tpu.vector_store %arg5[%c0_7, %c0_8, %c0_9], %10 {strides = array<i32>} : memref<1x2x256xf32, #tpu.memory_space<vmem>>, vector<1x2x256xf32>,
    %12 = vector.extract_strided_slice %6 {offsets = [64, 0], sizes = [8, 256], strides = [1, 1]} : vector<80x256xf32> to vector<8x256xf32>
    %13 = vector.extract_strided_slice %6 {offsets = [72, 0], sizes = [8, 256], strides = [1, 1]} : vector<80x256xf32> to vector<8x256xf32>
    %14 = arith.mulf %12, %13 : vector<8x256xf32>
    %c0_10 = arith.constant 0 : index
    %c0_11 = arith.constant 0 : index
    %c0_12 = arith.constant 0 : index
    %15 = vector.load %arg6[%c0_10, %c0_11, %c0_12] : memref<1x16x256xf32, #tpu.memory_space<vmem>>, vector<1x8x256xf32>
    %16 = vector.shape_cast %15 : vector<1x8x256xf32> to vector<8x256xf32>
    %17 = vector.shape_cast %14 : vector<8x256xf32> to vector<1x8x256xf32>
    tpu.vector_store %arg6[%c0_10, %c0_11, %c0_12], %17 {strides = array<i32>} : memref<1x16x256xf32, #tpu.memory_space<vmem>>, vector<1x8x256xf32>,
    %c0_13 = arith.constant 0 : index
    %c8 = arith.constant 8 : index
    %c0_14 = arith.constant 0 : index
    %18 = vector.load %arg6[%c0_13, %c8, %c0_14] : memref<1x16x256xf32, #tpu.memory_space<vmem>>, vector<1x8x256xf32>
    %19 = vector.shape_cast %18 : vector<1x8x256xf32> to vector<8x256xf32>
    %20 = vector.shape_cast %12 : vector<8x256xf32> to vector<1x8x256xf32>
    tpu.vector_store %arg6[%c0_13, %c8, %c0_14], %20 {strides = array<i32>} : memref<1x16x256xf32, #tpu.memory_space<vmem>>, vector<1x8x256xf32>,
    return
  }
  func.func @transform_0(%arg0: i32, %arg1: i32) -> (i32, i32, i32) {
    %c0_i32 = arith.constant 0 : i32
    %c0_i32_0 = arith.constant 0 : i32
    return %arg0, %c0_i32, %arg1 : i32, i32, i32
  }
  func.func @transform_1(%arg0: i32, %arg1: i32) -> (i32, i32) {
    %c0_i32 = arith.constant 0 : i32
    %c0_i32_0 = arith.constant 0 : i32
    %c0_i32_1 = arith.constant 0 : i32
    return %c0_i32, %c0_i32_0 : i32, i32
  }
  func.func @transform_2(%arg0: i32, %arg1: i32) -> (i32, i32) {
    %c0_i32 = arith.constant 0 : i32
    %c0_i32_0 = arith.constant 0 : i32
    %c0_i32_1 = arith.constant 0 : i32
    return %c0_i32, %c0_i32_0 : i32, i32
  }
  func.func @transform_3(%arg0: i32, %arg1: i32) -> (i32, i32, i32) {
    %c0_i32 = arith.constant 0 : i32
    %c0_i32_0 = arith.constant 0 : i32
    return %arg0, %c0_i32, %arg1 : i32, i32, i32
  }
  func.func @transform_4(%arg0: i32, %arg1: i32) -> (i32, i32, i32) {
    %c0_i32 = arith.constant 0 : i32
    %c0_i32_0 = arith.constant 0 : i32
    return %arg0, %c0_i32, %arg1 : i32, i32, i32
  }
}

module attributes {stable_mosaic.version = 11 : i64} {
  func.func @_bucket_attn_kernel(%arg0: i32, %arg1: i32, %arg2: i32, %arg3: memref<1x1x1x256xi32, #tpu.memory_space<vmem>>, %arg4: memref<1x16x256xf32, #tpu.memory_space<vmem>>, %arg5: memref<1x1x8x32xf32, #tpu.memory_space<vmem>>) attributes {dimension_semantics = [#tpu.dimension_semantics<parallel>, #tpu.dimension_semantics<parallel>, #tpu.dimension_semantics<parallel>], iteration_bounds = array<i64: 2, 2, 1>, scalar_prefetch = 0 : i64, scratch_operands = 0 : i64, tpu.core_type = #tpu.core_type<tc>, window_params = [{transform_indices = @transform_0, window_bounds = array<i64: 1, 1, 1, 256>}, {transform_indices = @transform_1, window_bounds = array<i64: 1, 16, 256>}, {transform_indices = @transform_2, window_bounds = array<i64: 1, 1, 8, 32>}]} {
    %c0 = arith.constant 0 : index
    %c0_0 = arith.constant 0 : index
    %c0_1 = arith.constant 0 : index
    %c0_2 = arith.constant 0 : index
    %0 = vector.load %arg3[%c0, %c0_0, %c0_1, %c0_2] : memref<1x1x1x256xi32, #tpu.memory_space<vmem>>, vector<1x1x1x256xi32>
    %1 = vector.shape_cast %0 : vector<1x1x1x256xi32> to vector<1x256xi32>
    %2 = tpu.iota {dimensions = array<i32: 0>} : vector<32x256xi32>
    %c32_i32 = arith.constant 32 : i32
    %3 = arith.muli %arg2, %c32_i32 : i32
    %4 = vector.broadcast %3 : i32 to vector<32x256xi32>
    %5 = arith.addi %2, %4 : vector<32x256xi32>
    %6 = vector.broadcast %1 : vector<1x256xi32> to vector<32x256xi32>
    %7 = arith.cmpi eq, %5, %6 : vector<32x256xi32>
    %8 = arith.extui %7 : vector<32x256xi1> to vector<32x256xi32>
    %9 = arith.sitofp %8 : vector<32x256xi32> to vector<32x256xf32>
    %c0_3 = arith.constant 0 : index
    %c0_4 = arith.constant 0 : index
    %c0_5 = arith.constant 0 : index
    %10 = vector.load %arg4[%c0_3, %c0_4, %c0_5] : memref<1x16x256xf32, #tpu.memory_space<vmem>>, vector<1x16x256xf32>
    %11 = vector.shape_cast %10 : vector<1x16x256xf32> to vector<16x256xf32>
    %cst = arith.constant dense<0.000000e+00> : vector<16x32xf32>
    %12 = tpu.matmul %11, %9, %cst {dimension_numbers = #tpu.dot_dimension_numbers<[1], [1], [0], [0], [0, 0, 1, 0], [], []>} : vector<16x256xf32>, vector<32x256xf32>, vector<16x32xf32> -> vector<16x32xf32>
    %13 = vector.extract_strided_slice %12 {offsets = [0, 0], sizes = [8, 32], strides = [1, 1]} : vector<16x32xf32> to vector<8x32xf32>
    %14 = vector.extract_strided_slice %12 {offsets = [8, 0], sizes = [8, 32], strides = [1, 1]} : vector<16x32xf32> to vector<8x32xf32>
    %15 = tpu.reciprocal %14 {approx = true} : vector<8x32xf32> -> vector<8x32xf32>
    %16 = arith.mulf %13, %15 : vector<8x32xf32>
    %17 = vector.shape_cast %16 : vector<8x32xf32> to vector<1x1x8x32xf32>
    %c0_6 = arith.constant 0 : index
    %c0_7 = arith.constant 0 : index
    %c0_8 = arith.constant 0 : index
    %c0_9 = arith.constant 0 : index
    %18 = vector.load %arg5[%c0_6, %c0_7, %c0_8, %c0_9] : memref<1x1x8x32xf32, #tpu.memory_space<vmem>>, vector<1x1x8x32xf32>
    tpu.vector_store %arg5[%c0_6, %c0_7, %c0_8, %c0_9], %17 {strides = array<i32>} : memref<1x1x8x32xf32, #tpu.memory_space<vmem>>, vector<1x1x8x32xf32>,
    return
  }
  func.func @transform_0(%arg0: i32, %arg1: i32, %arg2: i32) -> (i32, i32, i32, i32) {
    %c0_i32 = arith.constant 0 : i32
    %c0_i32_0 = arith.constant 0 : i32
    %c0_i32_1 = arith.constant 0 : i32
    return %arg0, %arg1, %c0_i32, %c0_i32_0 : i32, i32, i32, i32
  }
  func.func @transform_1(%arg0: i32, %arg1: i32, %arg2: i32) -> (i32, i32, i32) {
    %c0_i32 = arith.constant 0 : i32
    %c0_i32_0 = arith.constant 0 : i32
    %c0_i32_1 = arith.constant 0 : i32
    return %arg0, %c0_i32, %c0_i32_0 : i32, i32, i32
  }
  func.func @transform_2(%arg0: i32, %arg1: i32, %arg2: i32) -> (i32, i32, i32, i32) {
    %c0_i32 = arith.constant 0 : i32
    %c0_i32_0 = arith.constant 0 : i32
    return %arg0, %arg1, %c0_i32, %arg2 : i32, i32, i32, i32
  }
}

</mosaic_0001>

<llo_original>
// kernel: neg.1
$region0: #{neg.1}
  #allocation0 [shape = 's32[1]{0}', space=sflag, size = 0x4, scoped, tag = 'scoped memory for neg.1']
  %s0 = inlined_call_operand.vmem [shape: f32[2,2,256], index: 0, kind: input, shape index: {}]
  %s1 = inlined_call_operand.vmem [shape: f32[2,2,256], index: 1, kind: output, shape index: {}]
  %v2 = vld [vmem:[%s0] sm:$0x3]
  %3 = xla_tuple %v2
  %4 = xla_tuple %3
  %v5 = vxor.u32 %v2, 2147483648
  %6 = xla_tuple %v5
  %7 = vst [vmem:[%s1] sm:$0x3] %v5
  %s8 = scalar_lea.vmem %s0, 4
  %v9 = vld [vmem:[%s8] sm:$0x3]
  %10 = xla_tuple %v9
  %11 = xla_tuple %10
  %v12 = vxor.u32 %v9, 2147483648
  %13 = xla_tuple %v12
  %s14 = scalar_lea.vmem %s1, 4
  %15 = vst [vmem:[%s14] sm:$0x3] %v12
  %s16 = scalar_lea.vmem %s0, 2
  %v17 = vld [vmem:[%s16] sm:$0x3]
  %18 = xla_tuple %v17
  %19 = xla_tuple %18
  %v20 = vxor.u32 %v17, 2147483648
  %21 = xla_tuple %v20
  %s22 = scalar_lea.vmem %s1, 2
  %23 = vst [vmem:[%s22] sm:$0x3] %v20
  %s24 = scalar_lea.vmem %s0, 6
  %v25 = vld [vmem:[%s24] sm:$0x3]
  %26 = xla_tuple %v25
  %27 = xla_tuple %26
  %v28 = vxor.u32 %v25, 2147483648
  %29 = xla_tuple %v28
  %s30 = scalar_lea.vmem %s1, 6
  %31 = vst [vmem:[%s30] sm:$0x3] %v28

// kernel: nlsa_forward.2
$region0: #{nlsa_forward.2}
  #allocation0 [shape = 'u32[]', space=smem, size = 0x4, offset = 0x4, fixed_abs, tag = 'smem constant byte address 0x4 - core index']
  #allocation1 [shape = 'u32[144,128]{1,0:T(1,128)}', space=vmem, size = 0x12000, scoped, tag = 'internal scratch']
  %s0 = inlined_call_operand.vmem [shape: bf16[2,4,256], index: 0, kind: input, shape index: {}]
  %s1 = inlined_call_operand.vmem [shape: bf16[80,4], index: 1, kind: input, shape index: {}]
  %s2 = inlined_call_operand.vmem [shape: f32[80,1], index: 2, kind: input, shape index: {}]
  %s3 = inlined_call_operand.vmem [shape: f32[2,2,256], index: 3, kind: output, shape index: {0}]
  %s4 = inlined_call_operand.vmem [shape: f32[2,16,256], index: 4, kind: output, shape index: {1}]
  %5 = xla_tuple %s3, %s4
  %s6 = sld [smem:[#allocation0]]
  $region53: #{nlsa_forward.2} parent=0
    _
  %s8 = ssub.s32 1, %s6
  %s9 = scalar_select 0, %s8, %s6
  loop: start=0, step=1, limit=4
  $region2: #{nlsa_forward.2} parent=0 // loop_pre_header
    _
  $region3: #{nlsa_forward.2} parent=0 // loop_header
    %s11 = sphi 0, %s15
    %p12 = scmp.ge.s32.totalorder %s11, 4
    %s18 = sphi 0, %s30
    %s19 = sphi 0, %s26
    %s20 = sphi 0, %s18
    %s21 = sphi 0, %s19
    %s22 = sphi 0, %s20
    %s23 = sphi 0, %s21
    %s35 = sphi 0, %s37
    %s38 = sphi 0, %s35
    %s39 = sphi 0, %s38
    %s55 = sphi 0, %s39
    %s59 = sphi 0, %s59
    %s61 = sphi 0, %s59
    %s62 = sphi 0, %s61
    %s76 = sphi 0, %s62
    %s80 = sphi 0, %s80
    %s82 = sphi 0, %s80
    %s83 = sphi 0, %s82
    %s97 = sphi 0, %s83
    %s105 = sphi 0, %s107
    %s108 = sphi 0, %s105
    %s109 = sphi 0, %s108
    %s125 = sphi 0, %s109
    %s133 = sphi 0, %s135
    %s136 = sphi 0, %s133
    %s137 = sphi 0, %s136
    %s153 = sphi 0, %s137
  $region4: #{nlsa_forward.2} parent=0 // loop_header_branch
    %14 = sbr.rel (%p12) target = $region8
  $region5: #{nlsa_forward.2} parent=0 // loop_body
    %s16 = ssub.s32 %s11, 1
    %s17 = ssub.s32 %s11, 2
    %s24 = sadd.s32 1, %s19
    %p25 = scmp.ge.s32.totalorder %s24, 1
    %s26 = scalar_select %p25, 0, %s24
    %s27 = sadd.s32 1, %s18
    %s28 = scalar_select %p25, %s27, %s18
    %p29 = scmp.ge.s32.totalorder %s28, 2
    %s30 = scalar_select %p29, 0, %s28
    %s31 = ssub.s32 %s18, %s30
    %s32 = ssub.s32 %s19, %s26
    %s33 = sor.u32 %s31, %s32
    %p34 = scmp.eq.s32.totalorder %s33, 0
    %s36 = sadd.s32 %s35, 1
    %s37 = scalar_select %p34, %s35, %s36
    %p40 = pneg %p34
    %p41 = scmp.eq.s32.totalorder %s11, 1
    %p42 = por %p40, %p41
    %p43 = scmp.ne.s32.totalorder %s35, %s38
    %p44 = scmp.eq.s32.totalorder %s11, 0
    %p45 = por %p43, %p44
    %p46 = scmp.ne.s32.totalorder %s35, %s38
    %p47 = scmp.eq.s32.totalorder %s16, 1
    %p48 = por %p46, %p47
    %p49 = scmp.ne.s32.totalorder %s38, %s39
    %p50 = scmp.eq.s32.totalorder %s16, 0
    %p51 = por %p49, %p50
    %p52 = scmp.ne.s32.totalorder %s38, %s39
    %p53 = scmp.eq.s32.totalorder %s17, 1
    %p54 = por %p52, %p53
    %p56 = scmp.ne.s32.totalorder %s39, %s55
    %p57 = scmp.eq.s32.totalorder %s17, 0
    %p58 = por %p56, %p57
    %s60 = sadd.s32 %s59, 1
    %p63 = scmp.eq.s32.totalorder %s11, 1
    %p64 = scmp.ne.s32.totalorder %s59, %s61
    %p65 = scmp.eq.s32.totalorder %s11, 0
    %p66 = por %p64, %p65
    %p67 = scmp.ne.s32.totalorder %s59, %s61
    %p68 = scmp.eq.s32.totalorder %s16, 1
    %p69 = por %p67, %p68
    %p70 = scmp.ne.s32.totalorder %s61, %s62
    %p71 = scmp.eq.s32.totalorder %s16, 0
    %p72 = por %p70, %p71
    %p73 = scmp.ne.s32.totalorder %s61, %s62
    %p74 = scmp.eq.s32.totalorder %s17, 1
    %p75 = por %p73, %p74
    %p77 = scmp.ne.s32.totalorder %s62, %s76
    %p78 = scmp.eq.s32.totalorder %s17, 0
    %p79 = por %p77, %p78
    %s81 = sadd.s32 %s80, 1
    %p84 = scmp.eq.s32.totalorder %s11, 1
    %p85 = scmp.ne.s32.totalorder %s80, %s82
    %p86 = scmp.eq.s32.totalorder %s11, 0
    %p87 = por %p85, %p86
    %p88 = scmp.ne.s32.totalorder %s80, %s82
    %p89 = scmp.eq.s32.totalorder %s16, 1
    %p90 = por %p88, %p89
    %p91 = scmp.ne.s32.totalorder %s82, %s83
    %p92 = scmp.eq.s32.totalorder %s16, 0
    %p93 = por %p91, %p92
    %p94 = scmp.ne.s32.totalorder %s82, %s83
    %p95 = scmp.eq.s32.totalorder %s17, 1
    %p96 = por %p94, %p95
    %p98 = scmp.ne.s32.totalorder %s83, %s97
    %p99 = scmp.eq.s32.totalorder %s17, 0
    %p100 = por %p98, %p99
    %s101 = ssub.s32 %s18, %s30
    %s102 = ssub.s32 %s19, %s26
    %s103 = sor.u32 %s101, %s102
    %p104 = scmp.eq.s32.totalorder %s103, 0
    %s106 = sadd.s32 %s105, 1
    %s107 = scalar_select %p104, %s105, %s106
    %p110 = pneg %p104
    %p111 = scmp.eq.s32.totalorder %s11, 1
    %p112 = por %p110, %p111
    %p113 = scmp.ne.s32.totalorder %s105, %s108
    %p114 = scmp.eq.s32.totalorder %s11, 0
    %p115 = por %p113, %p114
    %p116 = scmp.ne.s32.totalorder %s105, %s108
    %p117 = scmp.eq.s32.totalorder %s16, 1
    %p118 = por %p116, %p117
    %p119 = scmp.ne.s32.totalorder %s108, %s109
    %p120 = scmp.eq.s32.totalorder %s16, 0
    %p121 = por %p119, %p120
    %p122 = scmp.ne.s32.totalorder %s108, %s109
    %p123 = scmp.eq.s32.totalorder %s17, 1
    %p124 = por %p122, %p123
    %p126 = scmp.ne.s32.totalorder %s109, %s125
    %p127 = scmp.eq.s32.totalorder %s17, 0
    %p128 = por %p126, %p127
    %s129 = ssub.s32 %s18, %s30
    %s130 = ssub.s32 %s19, %s26
    %s131 = sor.u32 %s129, %s130
    %p132 = scmp.eq.s32.totalorder %s131, 0
    %s134 = sadd.s32 %s133, 1
    %s135 = scalar_select %p132, %s133, %s134
    %p138 = pneg %p132
    %p139 = scmp.eq.s32.totalorder %s11, 1
    %p140 = por %p138, %p139
    %p141 = scmp.ne.s32.totalorder %s133, %s136
    %p142 = scmp.eq.s32.totalorder %s11, 0
    %p143 = por %p141, %p142
    %p144 = scmp.ne.s32.totalorder %s133, %s136
    %p145 = scmp.eq.s32.totalorder %s16, 1
    %p146 = por %p144, %p145
    %p147 = scmp.ne.s32.totalorder %s136, %s137
    %p148 = scmp.eq.s32.totalorder %s16, 0
    %p149 = por %p147, %p148
    %p150 = scmp.ne.s32.totalorder %s136, %s137
    %p151 = scmp.eq.s32.totalorder %s17, 1
    %p152 = por %p150, %p151
    %p154 = scmp.ne.s32.totalorder %s137, %s153
    %p155 = scmp.eq.s32.totalorder %s17, 0
    %p156 = por %p154, %p155
    %p157 = scmp.le.s32.totalorder 1, %s11
    %p158 = scmp.lt.s32.totalorder %s11, 3
    %p159 = pnand %p157, %p158
    %p160 = pneg %p159
    // Predicated region
    $region9: #{nlsa_forward.2} parent=5 // pred_check
      _
    $region10: #{nlsa_forward.2} parent=5 // pred_check_branch
      %162 = sbr.rel (%p159) target = $region12
    $region11: #{nlsa_forward.2} parent=5 // pred_region
      %s163 = ssub.s32 %s11, 1
      // Predicated region
      $region13: #{nlsa_forward.2} parent=11 // pred_check
        %p164 = pneg %p72
      $region14: #{nlsa_forward.2} parent=11 // pred_check_branch
        %166 = sbr.rel (%p164) target = $region16
      $region15: #{nlsa_forward.2} parent=11 // pred_region
        _
      $region16: #{nlsa_forward.2} parent=11 // pred_fallthru
        _
      // Predicated region
      $region17: #{nlsa_forward.2} parent=11 // pred_check
        %p167 = pneg %p93
      $region18: #{nlsa_forward.2} parent=11 // pred_check_branch
        %169 = sbr.rel (%p167) target = $region20
      $region19: #{nlsa_forward.2} parent=11 // pred_region
        _
      $region20: #{nlsa_forward.2} parent=11 // pred_fallthru
        _
    $region12: #{nlsa_forward.2} parent=5 // pred_fallthru
      _
    %p170 = scmp.lt.s32.totalorder %s11, 2
    // Predicated region
    $region21: #{nlsa_forward.2} parent=5 // pred_check
      %p171 = pneg %p170
    $region22: #{nlsa_forward.2} parent=5 // pred_check_branch
      %173 = sbr.rel (%p171) target = $region24
    $region23: #{nlsa_forward.2} parent=5 // pred_region
      // Predicated region
      $region25: #{nlsa_forward.2} parent=23 // pred_check
        %p174 = pneg %p45
      $region26: #{nlsa_forward.2} parent=23 // pred_check_branch
        %176 = sbr.rel (%p174) target = $region28
      $region27: #{nlsa_forward.2} parent=23 // pred_region
        %s177 = smul.u32 2, %s19
        %p178 = scmp.lt.s32.totalorder %s18, 1
        %s179 = scalar_select %p178, %s18, 1
        %p180 = scmp.lt.s32.totalorder %s177, 1
        %s181 = scalar_select %p180, %s177, 1
        %s182 = smul.addr %s179, 2
        %s183 = sadd.s32 %s181, %s182
        %s184 = smul.addr %s183, 2
        %s185 = scalar_lea.vmem %s0, %s184
        %s186 = smul.u32 2, %s19
      $region28: #{nlsa_forward.2} parent=23 // pred_fallthru
        _
    $region24: #{nlsa_forward.2} parent=5 // pred_fallthru
      _
    %p187 = scmp.le.s32.totalorder 1, %s11
    %p188 = scmp.lt.s32.totalorder %s11, 3
    %p189 = pnand %p187, %p188
    %p190 = pneg %p189
    // Predicated region
    $region29: #{nlsa_forward.2} parent=5 // pred_check
      _
    $region30: #{nlsa_forward.2} parent=5 // pred_check_branch
      %192 = sbr.rel (%p189) target = $region32
    $region31: #{nlsa_forward.2} parent=5 // pred_region
      %s193 = ssub.s32 %s11, 1
      %s194 = smul.u32 2, %s21
      %p195 = scmp.lt.s32.totalorder %s20, 1
      %s196 = scalar_select %p195, %s20, 1
      %p197 = scmp.lt.s32.totalorder %s194, 1
      %s198 = scalar_select %p197, %s194, 1
      %s199 = smul.addr %s196, 2
      %s200 = sadd.s32 %s198, %s199
      %s201 = smul.addr %s200, 2
      %s202 = scalar_lea.vmem %s0, %s201
      %p203 = pneg %p51
      %p204 = pneg %p48
      %p205 = pneg %p72
      %p206 = pneg %p69
      %p207 = pneg %p93
      %p208 = pneg %p90
      %p209 = pneg %p121
      %p210 = pneg %p118
      %s211 = smul.u32 2, %s21
      %p212 = scmp.lt.s32.totalorder %s20, 1
      %s213 = scalar_select %p212, %s20, 1
      %p214 = scmp.lt.s32.totalorder %s211, 1
      %s215 = scalar_select %p214, %s211, 1
      %s216 = smul.addr %s213, 2
      %s217 = sadd.s32 %s215, %s216
      %s218 = smul.addr %s217, 2
      %s219 = scalar_lea.vmem %s3, %s218
      %p220 = pneg %p149
      %p221 = pneg %p146
      %s222 = smul.u32 2, %s21
      %p223 = scmp.lt.s32.totalorder %s20, 1
      %s224 = scalar_select %p223, %s20, 1
      %p225 = scmp.lt.s32.totalorder %s222, 1
      %s226 = scalar_select %p225, %s222, 1
      %s227 = smul.addr %s224, 4
      %s228 = sadd.s32 %s226, %s227
      %s229 = smul.addr %s228, 8
      %s230 = scalar_lea.vmem %s4, %s229
      %s231 = smul.u32 2, %s21
      %p232 = scmp.lt.s32.totalorder %s20, 1
      %s233 = scalar_select %p232, %s20, 1
      %p234 = scmp.lt.s32.totalorder %s231, 1
      %s235 = scalar_select %p234, %s231, 1
      %s236 = smul.addr %s233, 2
      %s237 = sadd.s32 %s235, %s236
      %s238 = smul.addr %s237, 2
      %s239 = scalar_lea.vmem %s0, %s238
      %s240 = smul.u32 2, %s21
      %s241 = smul.u32 2, %s21
      %p242 = scmp.lt.s32.totalorder %s20, 1
      %s243 = scalar_select %p242, %s20, 1
      %p244 = scmp.lt.s32.totalorder %s241, 1
      %s245 = scalar_select %p244, %s241, 1
      %s246 = smul.addr %s243, 2
      %s247 = sadd.s32 %s245, %s246
      %s248 = smul.addr %s247, 2
      %s249 = scalar_lea.vmem %s3, %s248
      %s250 = smul.u32 2, %s21
      %s251 = smul.u32 2, %s21
      %p252 = scmp.lt.s32.totalorder %s20, 1
      %s253 = scalar_select %p252, %s20, 1
      %p254 = scmp.lt.s32.totalorder %s251, 1
      %s255 = scalar_select %p254, %s251, 1
      %s256 = smul.addr %s253, 4
      %s257 = sadd.s32 %s255, %s256
      %s258 = smul.addr %s257, 8
      %s259 = scalar_lea.vmem %s4, %s258
      %s260 = smul.u32 2, %s21
      %v262 = vld [vmem:[%s239] sm:$0xf]
      %v263 = vld [vmem:[%s1] sm:$0xf]
      %v264 = vld [vmem:[%s1 + $0x4] sm:$0xf]
      %v265 = vld [vmem:[%s1 + $0x8] sm:$0xf]
      %v266 = vld [vmem:[%s1 + $0xc] sm:$0xf]
      %v267 = vld [vmem:[%s1 + $0x10] sm:$0xf]
      %v268 = vld [vmem:[%s1 + $0x14] sm:$0xf]
      %v269 = vld [vmem:[%s1 + $0x18] sm:$0xf]
      %v270 = vld [vmem:[%s1 + $0x1c] sm:$0xf]
      %v271 = vld [vmem:[%s1 + $0x20] sm:$0xf]
      %v272 = vld [vmem:[%s1 + $0x24] sm:$0xf]
      %v273 = vld [vmem:[%s2] sm:$0xff]
      %v274 = vld [vmem:[%s2 + $0x8] sm:$0xff]
      %v275 = vld [vmem:[%s2 + $0x10] sm:$0xff]
      %v276 = vld [vmem:[%s2 + $0x18] sm:$0xff]
      %v277 = vld [vmem:[%s2 + $0x20] sm:$0xff]
      %v278 = vld [vmem:[%s2 + $0x28] sm:$0xff]
      %v279 = vld [vmem:[%s2 + $0x30] sm:$0xff]
      %v280 = vld [vmem:[%s2 + $0x38] sm:$0xff]
      %v281 = vld [vmem:[%s2 + $0x40] sm:$0xff]
      %v282 = vld [vmem:[%s2 + $0x48] sm:$0xff]
      %284 = vset.pattern.permute.xlu0 0
      %285 = vperm.xlu0 %284, %v273
      %v286 = vpop.permute.xlu0 %285
      %289 = vset.pattern.permute.xlu0 0
      %290 = vperm.xlu0 %289, %v274
      %v291 = vpop.permute.xlu0 %290
      %294 = vset.pattern.permute.xlu0 0
      %295 = vperm.xlu0 %294, %v275
      %v296 = vpop.permute.xlu0 %295
      %299 = vset.pattern.permute.xlu0 0
      %300 = vperm.xlu0 %299, %v276
      %v301 = vpop.permute.xlu0 %300
      %304 = vset.pattern.permute.xlu0 0
      %305 = vperm.xlu0 %304, %v277
      %v306 = vpop.permute.xlu0 %305
      %309 = vset.pattern.permute.xlu0 0
      %310 = vperm.xlu0 %309, %v278
      %v311 = vpop.permute.xlu0 %310
      %314 = vset.pattern.permute.xlu0 0
      %315 = vperm.xlu0 %314, %v279
      %v316 = vpop.permute.xlu0 %315
      %319 = vset.pattern.permute.xlu0 0
      %320 = vperm.xlu0 %319, %v280
      %v321 = vpop.permute.xlu0 %320
      %324 = vset.pattern.permute.xlu0 0
      %325 = vperm.xlu0 %324, %v281
      %v326 = vpop.permute.xlu0 %325
      %329 = vset.pattern.permute.xlu0 0
      %330 = vperm.xlu0 %329, %v282
      %v331 = vpop.permute.xlu0 %330
      %v343 = vunpack.c.l.b16 %v263
      %v344 = vunpack.c.l.b16 %v264
      %v345 = vunpack.c.l.b16 %v265
      %v346 = vunpack.c.l.b16 %v266
      %v347 = vunpack.c.l.b16 %v267
      %v348 = vunpack.c.l.b16 %v268
      %v349 = vunpack.c.l.b16 %v269
      %v350 = vunpack.c.l.b16 %v270
      %v351 = vunpack.c.l.b16 %v271
      %v352 = vunpack.c.l.b16 %v272
      %v353 = vpack.c.b16 %v344, %v343
      %v354 = vpack.c.b16 %v346, %v345
      %v355 = vpack.c.b16 %v348, %v347
      %v356 = vpack.c.b16 %v350, %v349
      %v357 = vpack.c.b16 %v352, %v351
      %v360 = vunpack.c.l.s4 1983009808
      %v361 = vunpack.c.0.s8 %v360
      %v362 = vlaneseq
      %v363 = vshrl.u32 %v362, 7
      %v364 = vsub.s32 %v361, %v363
      %v365 = vrot.slane %v262, %v364
      %v366 = vcombine.high %v365, %v365
      %vm367 = vcmask 31744
      %v369 = vsel %vm367, %v353, 0
      %v372 = vsel %vm367, %v354, 0
      %v375 = vsel %vm367, %v355, 0
      %v378 = vsel %vm367, %v356, 0
      %v381 = vsel %vm367, %v357, 0
      %vm383 = vcmask 1041408
      %v385 = vsel %vm383, %v365, 0
      %v388 = vsel %vm383, %v366, 0
      %390 = vmatprep.subr.bf16.mxu0 %v388
      %391 = vmatpush1.bf16.msra.mxu0 %v385
      %392 = vmatprep.subr.bf16.mxu0 0
      %393 = vmatpush1.bf16.msra.mxu0 0
      %394 = vmatprep.subr.bf16.mxu0 0
      %395 = vmatpush1.bf16.msra.mxu0 0
      %396 = vmatprep.subr.bf16.mxu0 0
      %397 = vmatpush1.bf16.msra.mxu0 0
      %398 = vmatprep.subr.bf16.mxu0 0
      %399 = vmatpush1.bf16.msra.mxu0 0
      %400 = vmatprep.subr.bf16.mxu0 0
      %401 = vmatpush1.bf16.msra.mxu0 0
      %402 = vmatprep.subr.bf16.mxu0 0
      %403 = vmatpush1.bf16.msra.mxu0 0
      %404 = vmatprep.subr.bf16.mxu0 0
      %405 = vmatpush1.bf16.msra.mxu0 0
      %406 = vmatprep.subr.bf16.mxu0 0
      %407 = vmatpush1.bf16.msra.mxu0 0
      %408 = vmatprep.subr.bf16.mxu0 0
      %409 = vmatpush1.bf16.msra.mxu0 0
      %410 = vmatprep.subr.bf16.mxu0 0
      %411 = vmatpush1.bf16.msra.mxu0 0
      %412 = vmatprep.subr.bf16.mxu0 0
      %413 = vmatpush1.bf16.msra.mxu0 0
      %414 = vmatprep.subr.bf16.mxu0 0
      %415 = vmatpush1.bf16.msra.mxu0 0
      %416 = vmatprep.subr.bf16.mxu0 0
      %417 = vmatpush1.bf16.msra.mxu0 0
      %418 = vmatprep.subr.bf16.mxu0 0
      %419 = vmatpush1.bf16.msra.mxu0 0
      %420 = vmatprep.subr.bf16.mxu0 0
      %421 = vmatpush1.bf16.msra.mxu0 0
      %422 = vmatprep.mubr.bf16.mxu0 0
      %423 = vmatmul.mubr.bf16.gmra.mrb[0].mxu0 %v369
      %v424 = vpop.f32.mrb[0].mxu0
      %v425 = vadd.f32 %v286, %v424
      %v426 = vpop.f32.mrb[0].mxu0
      %v427 = vadd.f32 %v286, %v426
      %v428 = vpop.f32.mrb[0].mxu0
      %v429 = vadd.f32 %v291, %v428
      %v430 = vpop.f32.mrb[0].mxu0
      %v431 = vadd.f32 %v291, %v430
      %432 = vmatprep.mubr.bf16.mxu0 0
      %433 = vmatmul.mubr.bf16.gmra.mrb[0].mxu0 %v372
      %v434 = vpop.f32.mrb[0].mxu0
      %v435 = vadd.f32 %v296, %v434
      %v436 = vpop.f32.mrb[0].mxu0
      %v437 = vadd.f32 %v296, %v436
      %v438 = vpop.f32.mrb[0].mxu0
      %v439 = vadd.f32 %v301, %v438
      %v440 = vpop.f32.mrb[0].mxu0
      %v441 = vadd.f32 %v301, %v440
      %442 = vmatprep.mubr.bf16.mxu0 0
      %443 = vmatmul.mubr.bf16.gmra.mrb[0].mxu0 %v375
      %v444 = vpop.f32.mrb[0].mxu0
      %v445 = vadd.f32 %v306, %v444
      %v446 = vpop.f32.mrb[0].mxu0
      %v447 = vadd.f32 %v306, %v446
      %v448 = vpop.f32.mrb[0].mxu0
      %v449 = vadd.f32 %v311, %v448
      %v450 = vpop.f32.mrb[0].mxu0
      %v451 = vadd.f32 %v311, %v450
      %452 = vmatprep.mubr.bf16.mxu0 0
      %453 = vmatmul.mubr.bf16.gmra.mrb[0].mxu0 %v378
      %v454 = vpop.f32.mrb[0].mxu0
      %v455 = vadd.f32 %v316, %v454
      %v456 = vpop.f32.mrb[0].mxu0
      %v457 = vadd.f32 %v316, %v456
      %v458 = vpop.f32.mrb[0].mxu0
      %v459 = vadd.f32 %v321, %v458
      %v460 = vpop.f32.mrb[0].mxu0
      %v461 = vadd.f32 %v321, %v460
      %462 = vmatprep.mubr.bf16.mxu0 0
      %463 = vmatmul.mubr.bf16.gmra.mrb[0].mxu0 %v381
      %v464 = vpop.f32.mrb[0].mxu0
      %v465 = vadd.f32 %v326, %v464
      %v466 = vpop.f32.mrb[0].mxu0
      %v467 = vadd.f32 %v326, %v466
      %v468 = vpop.f32.mrb[0].mxu0
      %v469 = vadd.f32 %v331, %v468
      %v470 = vpop.f32.mrb[0].mxu0
      %v471 = vadd.f32 %v331, %v470
      %472 = vdwg.mxu0
      %v473 = vmax.f32 %v425, %v429
      %v474 = vmax.f32 %v473, %v435
      %v475 = vmax.f32 %v474, %v439
      %v476 = vrot.slane %v475, 4
      %v477 = vmax.f32 %v475, %v476
      %v478 = vrot.slane %v477, 2
      %v479 = vmax.f32 %v477, %v478
      %v480 = vrot.slane %v479, 1
      %v481 = vmax.f32 %v479, %v480
      %v482 = vmax.f32 %v427, %v431
      %v483 = vmax.f32 %v482, %v437
      %v484 = vmax.f32 %v483, %v441
      %v485 = vrot.slane %v484, 4
      %v486 = vmax.f32 %v484, %v485
      %v487 = vrot.slane %v486, 2
      %v488 = vmax.f32 %v486, %v487
      %v489 = vrot.slane %v488, 1
      %v490 = vmax.f32 %v488, %v489
      %v491 = vmax.f32 %v445, %v449
      %v492 = vmax.f32 %v491, %v455
      %v493 = vmax.f32 %v492, %v459
      %v494 = vrot.slane %v493, 4
      %v495 = vmax.f32 %v493, %v494
      %v496 = vrot.slane %v495, 2
      %v497 = vmax.f32 %v495, %v496
      %v498 = vrot.slane %v497, 1
      %v499 = vmax.f32 %v497, %v498
      %v500 = vmax.f32 %v447, %v451
      %v501 = vmax.f32 %v500, %v457
      %v502 = vmax.f32 %v501, %v461
      %v503 = vrot.slane %v502, 4
      %v504 = vmax.f32 %v502, %v503
      %v505 = vrot.slane %v504, 2
      %v506 = vmax.f32 %v504, %v505
      %v507 = vrot.slane %v506, 1
      %v508 = vmax.f32 %v506, %v507
      %v513 = vcombine.low %v481, %v490
      %v515 = vunpack.c.l.s4 1983009808
      %v516 = vunpack.c.0.s8 %v515
      %v517 = vlaneseq
      %v518 = vshrl.u32 %v517, 7
      %v519 = vsub.s32 %v516, %v518
      %v520 = vrot.slane %v513, %v519
      %v521 = vcombine.low %v499, %v508
      %v523 = vunpack.c.l.s4 1983009808
      %v524 = vunpack.c.0.s8 %v523
      %v525 = vlaneseq
      %v526 = vshrl.u32 %v525, 7
      %v527 = vsub.s32 %v524, %v526
      %v528 = vrot.slane %v521, %v527
      %vm529 = vcmask 1044484
      %v530 = vsel %vm529, %v520, %v520
      %vm531 = vcmask 1046534
      %v532 = vsel %vm531, %v520, %v530
      %v533 = vrot.slane %v528, 7
      %vm534 = vcmask 1041409
      %v535 = vsel %vm534, %v533, %v532
      %vm536 = vcmask 1043459
      %v537 = vsel %vm536, %v533, %v535
      %vm538 = vcmask 1045509
      %v539 = vsel %vm538, %v533, %v537
      %vm540 = vcmask 1047559
      %v541 = vsel %vm540, %v533, %v539
      %543 = vst [vmem:[%s249] sm:$0xf] %v541
      %v544 = vmul.f32 %v465, %v469
      %v545 = vmul.f32 %v467, %v471
      %546 = vst [vmem:[%s259] sm:$0xff] %v544
      %547 = vst [vmem:[%s259 + $0x8] sm:$0xff] %v545
      %548 = vst [vmem:[%s259 + $0x10] sm:$0xff] %v465
      %549 = vst [vmem:[%s259 + $0x18] sm:$0xff] %v467
      %s550 = smul.u32 2, %s21
      %p551 = scmp.lt.s32.totalorder %s20, 1
      %s552 = scalar_select %p551, %s20, 1
      %p553 = scmp.lt.s32.totalorder %s550, 1
      %s554 = scalar_select %p553, %s550, 1
      %s555 = smul.addr %s552, 2
      %s556 = sadd.s32 %s554, %s555
      %s557 = smul.addr %s556, 2
      %s558 = scalar_lea.vmem %s3, %s557
      %s559 = smul.u32 2, %s21
      %p560 = scmp.lt.s32.totalorder %s20, 1
      %s561 = scalar_select %p560, %s20, 1
      %p562 = scmp.lt.s32.totalorder %s559, 1
      %s563 = scalar_select %p562, %s559, 1
      %s564 = smul.addr %s561, 4
      %s565 = sadd.s32 %s563, %s564
      %s566 = smul.addr %s565, 8
      %s567 = scalar_lea.vmem %s4, %s566
      // Predicated region
      $region33: #{nlsa_forward.2} parent=31 // pred_check
        %p568 = pneg %p118
      $region34: #{nlsa_forward.2} parent=31 // pred_check_branch
        %570 = sbr.rel (%p568) target = $region36
      $region35: #{nlsa_forward.2} parent=31 // pred_region
        %s571 = smul.u32 2, %s21
      $region36: #{nlsa_forward.2} parent=31 // pred_fallthru
        _
      // Predicated region
      $region37: #{nlsa_forward.2} parent=31 // pred_check
        %p572 = pneg %p146
      $region38: #{nlsa_forward.2} parent=31 // pred_check_branch
        %574 = sbr.rel (%p572) target = $region40
      $region39: #{nlsa_forward.2} parent=31 // pred_region
        %s575 = smul.u32 2, %s21
      $region40: #{nlsa_forward.2} parent=31 // pred_fallthru
        _
    $region32: #{nlsa_forward.2} parent=5 // pred_fallthru
      _
    %p576 = scmp.le.s32.totalorder 2, %s11
    // Predicated region
    $region41: #{nlsa_forward.2} parent=5 // pred_check
      %p577 = pneg %p576
    $region42: #{nlsa_forward.2} parent=5 // pred_check_branch
      %579 = sbr.rel (%p577) target = $region44
    $region43: #{nlsa_forward.2} parent=5 // pred_region
      %s580 = ssub.s32 %s11, 2
      // Predicated region
      $region45: #{nlsa_forward.2} parent=43 // pred_check
        %p581 = pneg %p124
      $region46: #{nlsa_forward.2} parent=43 // pred_check_branch
        %583 = sbr.rel (%p581) target = $region48
      $region47: #{nlsa_forward.2} parent=43 // pred_region
        %s584 = smul.u32 2, %s23
        %p585 = scmp.lt.s32.totalorder %s22, 1
        %s586 = scalar_select %p585, %s22, 1
        %p587 = scmp.lt.s32.totalorder %s584, 1
        %s588 = scalar_select %p587, %s584, 1
        %s589 = smul.addr %s586, 2
        %s590 = sadd.s32 %s588, %s589
        %s591 = smul.addr %s590, 2
        %s592 = scalar_lea.vmem %s3, %s591
      $region48: #{nlsa_forward.2} parent=43 // pred_fallthru
        _
      // Predicated region
      $region49: #{nlsa_forward.2} parent=43 // pred_check
        %p593 = pneg %p152
      $region50: #{nlsa_forward.2} parent=43 // pred_check_branch
        %595 = sbr.rel (%p593) target = $region52
      $region51: #{nlsa_forward.2} parent=43 // pred_region
        %s596 = smul.u32 2, %s23
        %p597 = scmp.lt.s32.totalorder %s22, 1
        %s598 = scalar_select %p597, %s22, 1
        %p599 = scmp.lt.s32.totalorder %s596, 1
        %s600 = scalar_select %p599, %s596, 1
        %s601 = smul.addr %s598, 4
        %s602 = sadd.s32 %s600, %s601
        %s603 = smul.addr %s602, 8
        %s604 = scalar_lea.vmem %s4, %s603
      $region52: #{nlsa_forward.2} parent=43 // pred_fallthru
        _
    $region44: #{nlsa_forward.2} parent=5 // pred_fallthru
      _
  $region6: #{nlsa_forward.2} parent=0 // loop_footer
    %s15 = sadd.s32 1, %s11
  $region7: #{nlsa_forward.2} parent=0 // loop_footer_branch
    %10 = sbr.rel target = $region3
  $region8: #{nlsa_forward.2} parent=0 // loop_exit
    _

// kernel: nlsa_forward.3
$region0: #{nlsa_forward.3}
  #allocation0 [shape = 'u32[]', space=smem, size = 0x4, offset = 0x4, fixed_abs, tag = 'smem constant byte address 0x4 - core index']
  #allocation1 [shape = 'u32[144,128]{1,0:T(1,128)}', space=vmem, size = 0x12000, scoped, tag = 'internal scratch']
  %s0 = inlined_call_operand.vmem [shape: s32[2,2,1,256], index: 0, kind: input, shape index: {}]
  %s1 = inlined_call_operand.vmem [shape: f32[2,16,256], index: 1, kind: input, shape index: {}]
  %s2 = inlined_call_operand.vmem [shape: f32[2,2,8,32], index: 2, kind: output, shape index: {}]
  %s3 = sld [smem:[#allocation0]]
  $region41: #{nlsa_forward.3} parent=0
    _
  %s5 = ssub.s32 1, %s3
  %s6 = scalar_select 0, %s5, %s3
  loop: start=0, step=1, limit=6
  $region2: #{nlsa_forward.3} parent=0 // loop_pre_header
    _
  $region3: #{nlsa_forward.3} parent=0 // loop_header
    %s8 = sphi 0, %s12
    %p9 = scmp.ge.s32.totalorder %s8, 6
    %s15 = sphi 0, %s34
    %s16 = sphi 0, %s30
    %s17 = sphi 0, %s26
    %s18 = sphi 0, %s15
    %s19 = sphi 0, %s16
    %s20 = sphi 0, %s17
    %s21 = sphi 0, %s18
    %s22 = sphi 0, %s19
    %s23 = sphi 0, %s20
    %s39 = sphi 0, %s41
    %s42 = sphi 0, %s39
    %s43 = sphi 0, %s42
    %s59 = sphi 0, %s43
    %s65 = sphi 0, %s67
    %s68 = sphi 0, %s65
    %s69 = sphi 0, %s68
    %s85 = sphi 0, %s69
    %s95 = sphi 0, %s97
    %s98 = sphi 0, %s95
    %s99 = sphi 0, %s98
    %s115 = sphi 0, %s99
  $region4: #{nlsa_forward.3} parent=0 // loop_header_branch
    %11 = sbr.rel (%p9) target = $region8
  $region5: #{nlsa_forward.3} parent=0 // loop_body
    %s13 = ssub.s32 %s8, 1
    %s14 = ssub.s32 %s8, 2
    %s24 = sadd.s32 1, %s17
    %p25 = scmp.ge.s32.totalorder %s24, 1
    %s26 = scalar_select %p25, 0, %s24
    %s27 = sadd.s32 1, %s16
    %s28 = scalar_select %p25, %s27, %s16
    %p29 = scmp.ge.s32.totalorder %s28, 2
    %s30 = scalar_select %p29, 0, %s28
    %s31 = sadd.s32 1, %s15
    %s32 = scalar_select %p29, %s31, %s15
    %p33 = scmp.ge.s32.totalorder %s32, 2
    %s34 = scalar_select %p33, 0, %s32
    %s35 = ssub.s32 %s15, %s34
    %s36 = ssub.s32 %s16, %s30
    %s37 = sor.u32 %s35, %s36
    %p38 = scmp.eq.s32.totalorder %s37, 0
    %s40 = sadd.s32 %s39, 1
    %s41 = scalar_select %p38, %s39, %s40
    %p44 = pneg %p38
    %p45 = scmp.eq.s32.totalorder %s8, 3
    %p46 = por %p44, %p45
    %p47 = scmp.ne.s32.totalorder %s39, %s42
    %p48 = scmp.eq.s32.totalorder %s8, 0
    %p49 = por %p47, %p48
    %p50 = scmp.ne.s32.totalorder %s39, %s42
    %p51 = scmp.eq.s32.totalorder %s13, 3
    %p52 = por %p50, %p51
    %p53 = scmp.ne.s32.totalorder %s42, %s43
    %p54 = scmp.eq.s32.totalorder %s13, 0
    %p55 = por %p53, %p54
    %p56 = scmp.ne.s32.totalorder %s42, %s43
    %p57 = scmp.eq.s32.totalorder %s14, 3
    %p58 = por %p56, %p57
    %p60 = scmp.ne.s32.totalorder %s43, %s59
    %p61 = scmp.eq.s32.totalorder %s14, 0
    %p62 = por %p60, %p61
    %s63 = ssub.s32 %s15, %s34
    %p64 = scmp.eq.s32.totalorder %s63, 0
    %s66 = sadd.s32 %s65, 1
    %s67 = scalar_select %p64, %s65, %s66
    %p70 = pneg %p64
    %p71 = scmp.eq.s32.totalorder %s8, 3
    %p72 = por %p70, %p71
    %p73 = scmp.ne.s32.totalorder %s65, %s68
    %p74 = scmp.eq.s32.totalorder %s8, 0
    %p75 = por %p73, %p74
    %p76 = scmp.ne.s32.totalorder %s65, %s68
    %p77 = scmp.eq.s32.totalorder %s13, 3
    %p78 = por %p76, %p77
    %p79 = scmp.ne.s32.totalorder %s68, %s69
    %p80 = scmp.eq.s32.totalorder %s13, 0
    %p81 = por %p79, %p80
    %p82 = scmp.ne.s32.totalorder %s68, %s69
    %p83 = scmp.eq.s32.totalorder %s14, 3
    %p84 = por %p82, %p83
    %p86 = scmp.ne.s32.totalorder %s69, %s85
    %p87 = scmp.eq.s32.totalorder %s14, 0
    %p88 = por %p86, %p87
    %s89 = ssub.s32 %s15, %s34
    %s90 = ssub.s32 %s16, %s30
    %s91 = sor.u32 %s89, %s90
    %s92 = ssub.s32 %s17, %s26
    %s93 = sor.u32 %s91, %s92
    %p94 = scmp.eq.s32.totalorder %s93, 0
    %s96 = sadd.s32 %s95, 1
    %s97 = scalar_select %p94, %s95, %s96
    %p100 = pneg %p94
    %p101 = scmp.eq.s32.totalorder %s8, 3
    %p102 = por %p100, %p101
    %p103 = scmp.ne.s32.totalorder %s95, %s98
    %p104 = scmp.eq.s32.totalorder %s8, 0
    %p105 = por %p103, %p104
    %p106 = scmp.ne.s32.totalorder %s95, %s98
    %p107 = scmp.eq.s32.totalorder %s13, 3
    %p108 = por %p106, %p107
    %p109 = scmp.ne.s32.totalorder %s98, %s99
    %p110 = scmp.eq.s32.totalorder %s13, 0
    %p111 = por %p109, %p110
    %p112 = scmp.ne.s32.totalorder %s98, %s99
    %p113 = scmp.eq.s32.totalorder %s14, 3
    %p114 = por %p112, %p113
    %p116 = scmp.ne.s32.totalorder %s99, %s115
    %p117 = scmp.eq.s32.totalorder %s14, 0
    %p118 = por %p116, %p117
    %p119 = scmp.le.s32.totalorder 1, %s8
    %p120 = scmp.lt.s32.totalorder %s8, 5
    %p121 = pnand %p119, %p120
    %p122 = pneg %p121
    // Predicated region
    $region9: #{nlsa_forward.3} parent=5 // pred_check
      _
    $region10: #{nlsa_forward.3} parent=5 // pred_check_branch
      %124 = sbr.rel (%p121) target = $region12
    $region11: #{nlsa_forward.3} parent=5 // pred_region
      %s125 = ssub.s32 %s8, 1
    $region12: #{nlsa_forward.3} parent=5 // pred_fallthru
      _
    %p126 = scmp.lt.s32.totalorder %s8, 4
    // Predicated region
    $region13: #{nlsa_forward.3} parent=5 // pred_check
      %p127 = pneg %p126
    $region14: #{nlsa_forward.3} parent=5 // pred_check_branch
      %129 = sbr.rel (%p127) target = $region16
    $region15: #{nlsa_forward.3} parent=5 // pred_region
      // Predicated region
      $region17: #{nlsa_forward.3} parent=15 // pred_check
        %p130 = pneg %p49
      $region18: #{nlsa_forward.3} parent=15 // pred_check_branch
        %132 = sbr.rel (%p130) target = $region20
      $region19: #{nlsa_forward.3} parent=15 // pred_region
        %p133 = scmp.lt.s32.totalorder %s15, 1
        %s134 = scalar_select %p133, %s15, 1
        %p135 = scmp.lt.s32.totalorder %s16, 1
        %s136 = scalar_select %p135, %s16, 1
        %s137 = smul.addr %s136, 2
        %s138 = smul.addr %s134, 4
        %s139 = sadd.s32 %s137, %s138
        %s140 = scalar_lea.vmem %s0, %s139
      $region20: #{nlsa_forward.3} parent=15 // pred_fallthru
        _
      // Predicated region
      $region21: #{nlsa_forward.3} parent=15 // pred_check
        %p141 = pneg %p75
      $region22: #{nlsa_forward.3} parent=15 // pred_check_branch
        %143 = sbr.rel (%p141) target = $region24
      $region23: #{nlsa_forward.3} parent=15 // pred_region
        %p144 = scmp.lt.s32.totalorder %s15, 1
        %s145 = scalar_select %p144, %s15, 1
        %s146 = smul.addr %s145, 4
        %s147 = smul.addr %s146, 8
        %s148 = scalar_lea.vmem %s1, %s147
      $region24: #{nlsa_forward.3} parent=15 // pred_fallthru
        _
    $region16: #{nlsa_forward.3} parent=5 // pred_fallthru
      _
    %p149 = scmp.le.s32.totalorder 1, %s8
    %p150 = scmp.lt.s32.totalorder %s8, 5
    %p151 = pnand %p149, %p150
    %p152 = pneg %p151
    // Predicated region
    $region25: #{nlsa_forward.3} parent=5 // pred_check
      _
    $region26: #{nlsa_forward.3} parent=5 // pred_check_branch
      %154 = sbr.rel (%p151) target = $region28
    $region27: #{nlsa_forward.3} parent=5 // pred_region
      %s155 = ssub.s32 %s8, 1
      %p156 = scmp.lt.s32.totalorder %s18, 1
      %s157 = scalar_select %p156, %s18, 1
      %p158 = scmp.lt.s32.totalorder %s19, 1
      %s159 = scalar_select %p158, %s19, 1
      %s160 = smul.addr %s159, 2
      %s161 = smul.addr %s157, 4
      %s162 = sadd.s32 %s160, %s161
      %s163 = scalar_lea.vmem %s0, %s162
      %p164 = pneg %p55
      %p165 = pneg %p52
      %p166 = scmp.lt.s32.totalorder %s18, 1
      %s167 = scalar_select %p166, %s18, 1
      %s168 = smul.addr %s167, 4
      %s169 = smul.addr %s168, 8
      %s170 = scalar_lea.vmem %s1, %s169
      %p171 = pneg %p81
      %p172 = pneg %p78
      %p173 = pneg %p111
      %p174 = pneg %p108
      %p175 = scmp.lt.s32.totalorder %s18, 1
      %s176 = scalar_select %p175, %s18, 1
      %p177 = scmp.lt.s32.totalorder %s19, 1
      %s178 = scalar_select %p177, %s19, 1
      %p179 = scmp.lt.s32.totalorder %s20, 0
      %s180 = scalar_select %p179, %s20, 0
      %s181 = sadd.s32 %s180, %s178
      %s182 = smul.addr %s176, 2
      %s183 = sadd.s32 %s181, %s182
      %s184 = smul.addr %s183, 8
      %s185 = scalar_lea.vmem %s2, %s184
      %p186 = scmp.lt.s32.totalorder %s18, 1
      %s187 = scalar_select %p186, %s18, 1
      %p188 = scmp.lt.s32.totalorder %s19, 1
      %s189 = scalar_select %p188, %s19, 1
      %s190 = smul.addr %s189, 2
      %s191 = smul.addr %s187, 4
      %s192 = sadd.s32 %s190, %s191
      %s193 = scalar_lea.vmem %s0, %s192
      %p194 = scmp.lt.s32.totalorder %s18, 1
      %s195 = scalar_select %p194, %s18, 1
      %s196 = smul.addr %s195, 4
      %s197 = smul.addr %s196, 8
      %s198 = scalar_lea.vmem %s1, %s197
      %p199 = scmp.lt.s32.totalorder %s18, 1
      %s200 = scalar_select %p199, %s18, 1
      %p201 = scmp.lt.s32.totalorder %s19, 1
      %s202 = scalar_select %p201, %s19, 1
      %p203 = scmp.lt.s32.totalorder %s20, 0
      %s204 = scalar_select %p203, %s20, 0
      %s205 = sadd.s32 %s204, %s202
      %s206 = smul.addr %s200, 2
      %s207 = sadd.s32 %s205, %s206
      %s208 = smul.addr %s207, 8
      %s209 = scalar_lea.vmem %s2, %s208
      %v210 = vld [vmem:[%s193] sm:$0x3]
      %v211 = vlaneseq
      %v212 = vshrl.u32 %v211, 7
      %v213 = vadd.s32 %v212, 8
      %v214 = vadd.s32 %v212, 16
      %v215 = vadd.s32 %v212, 24
      %s216 = smul.u32 %s20, 32
      %v217 = vstv %s216
      %v218 = vadd.s32 %v212, %v217
      %v219 = vadd.s32 %v213, %v217
      %v220 = vadd.s32 %v214, %v217
      %v221 = vadd.s32 %v215, %v217
      %v222 = vlaneseq
      %v223 = vshrl.u32 %v222, 7
      %v224 = vsub.s32 0, %v223
      %v225 = vrot.slane %v210, %v224
      %v226 = vlaneseq
      %v227 = vshrl.u32 %v226, 7
      %v228 = vsub.s32 1, %v227
      %v229 = vrot.slane %v210, %v228
      %vm230 = vcmp.eq.s32.totalorder %v218, %v225
      %vm231 = vcmp.eq.s32.totalorder %v218, %v229
      %vm232 = vcmp.eq.s32.totalorder %v219, %v225
      %vm233 = vcmp.eq.s32.totalorder %v219, %v229
      %vm234 = vcmp.eq.s32.totalorder %v220, %v225
      %vm235 = vcmp.eq.s32.totalorder %v220, %v229
      %vm236 = vcmp.eq.s32.totalorder %v221, %v225
      %vm237 = vcmp.eq.s32.totalorder %v221, %v229
      %v238 = vsel %vm230, 1, 0
      %v239 = vsel %vm231, 1, 0
      %v240 = vsel %vm232, 1, 0
      %v241 = vsel %vm233, 1, 0
      %v242 = vsel %vm234, 1, 0
      %v243 = vsel %vm235, 1, 0
      %v244 = vsel %vm236, 1, 0
      %v245 = vsel %vm237, 1, 0
      %v246 = vcvt.s32.f32 %v238
      %v247 = vcvt.s32.f32 %v239
      %v248 = vcvt.s32.f32 %v240
      %v249 = vcvt.s32.f32 %v241
      %v250 = vcvt.s32.f32 %v242
      %v251 = vcvt.s32.f32 %v243
      %v252 = vcvt.s32.f32 %v244
      %v253 = vcvt.s32.f32 %v245
      %v254 = vld [vmem:[%s198] sm:$0xff]
      %v255 = vld [vmem:[%s198 + $0x8] sm:$0xff]
      %v256 = vld [vmem:[%s198 + $0x10] sm:$0xff]
      %v257 = vld [vmem:[%s198 + $0x18] sm:$0xff]
      %258 = vmatprep.subr.mxu0 %v247
      %259 = vmatpush1.xpose.msra.mxu0 %v246
      %260 = vmatprep.subr.mxu0 %v249
      %261 = vmatpush1.xpose.msra.mxu0 %v248
      %262 = vmatprep.subr.mxu0 %v251
      %263 = vmatpush1.xpose.msra.mxu0 %v250
      %264 = vmatprep.subr.mxu0 %v253
      %265 = vmatpush1.xpose.msra.mxu0 %v252
      %266 = vmatprep.subr.mxu0 0.0
      %267 = vmatpush1.xpose.msra.mxu0 0.0
      %268 = vmatprep.subr.mxu0 0.0
      %269 = vmatpush1.xpose.msra.mxu0 0.0
      %270 = vmatprep.subr.mxu0 0.0
      %271 = vmatpush1.xpose.msra.mxu0 0.0
      %272 = vmatprep.subr.mxu0 0.0
      %273 = vmatpush1.xpose.msra.mxu0 0.0
      %274 = vmatprep.subr.mxu0 0.0
      %275 = vmatpush1.xpose.msra.mxu0 0.0
      %276 = vmatprep.subr.mxu0 0.0
      %277 = vmatpush1.xpose.msra.mxu0 0.0
      %278 = vmatprep.subr.mxu0 0.0
      %279 = vmatpush1.xpose.msra.mxu0 0.0
      %280 = vmatprep.subr.mxu0 0.0
      %281 = vmatpush1.xpose.msra.mxu0 0.0
      %282 = vmatprep.subr.mxu0 0.0
      %283 = vmatpush1.xpose.msra.mxu0 0.0
      %284 = vmatprep.subr.mxu0 0.0
      %285 = vmatpush1.xpose.msra.mxu0 0.0
      %286 = vmatprep.subr.mxu0 0.0
      %287 = vmatpush1.xpose.msra.mxu0 0.0
      %288 = vmatprep.subr.mxu0 0.0
      %289 = vmatpush1.xpose.msra.mxu0 0.0
      %290 = vmatprep.subr.mxu0 0.0
      %291 = vmatpush1.xpose.msra.mxu0 0.0
      %292 = vmatprep.subr.mxu0 0.0
      %293 = vmatpush1.xpose.msra.mxu0 0.0
      %294 = vmatprep.subr.mxu0 0.0
      %295 = vmatpush1.xpose.msra.mxu0 0.0
      %296 = vmatprep.subr.mxu0 0.0
      %297 = vmatpush1.xpose.msra.mxu0 0.0
      %298 = vmatprep.subr.mxu0 0.0
      %299 = vmatpush1.xpose.msra.mxu0 0.0
      %300 = vmatprep.subr.mxu0 0.0
      %301 = vmatpush1.xpose.msra.mxu0 0.0
      %302 = vmatprep.subr.mxu0 0.0
      %303 = vmatpush1.xpose.msra.mxu0 0.0
      %304 = vmatprep.subr.mxu0 0.0
      %305 = vmatpush1.xpose.msra.mxu0 0.0
      %306 = vmatprep.subr.mxu0 0.0
      %307 = vmatpush1.xpose.msra.mxu0 0.0
      %308 = vmatprep.subr.mxu0 0.0
      %309 = vmatpush1.xpose.msra.mxu0 0.0
      %310 = vmatprep.subr.mxu0 0.0
      %311 = vmatpush1.xpose.msra.mxu0 0.0
      %312 = vmatprep.subr.mxu0 0.0
      %313 = vmatpush1.xpose.msra.mxu0 0.0
      %314 = vmatprep.subr.mxu0 0.0
      %315 = vmatpush1.xpose.msra.mxu0 0.0
      %316 = vmatprep.subr.mxu0 0.0
      %317 = vmatpush1.xpose.msra.mxu0 0.0
      %318 = vmatprep.subr.mxu0 0.0
      %319 = vmatpush1.xpose.msra.mxu0 0.0
      %320 = vmatprep.subr.mxu0 0.0
      %321 = vmatpush1.xpose.msra.mxu0 0.0
      %322 = vmatprep.mubr.f32.mxu0 %v255
      %323 = vmatmul.mubr.f32.gmra.mrb[0].mxu0 %v254
      %v324 = vpop.f32.mrb[0].mxu0
      %v325 = vadd.f32 0.0, %v324
      %v326 = vpop.f32.mrb[0].mxu0
      %327 = vmatprep.mubr.f32.mxu0 %v257
      %328 = vmatmul.mubr.f32.gmra.mrb[0].mxu0 %v256
      %v329 = vpop.f32.mrb[0].mxu0
      %v330 = vadd.f32 0.0, %v329
      %v331 = vpop.f32.mrb[0].mxu0
      %332 = vdwg.mxu0
      %v333 = vrcp.pop %v330
      %v334 = vmul.f32 %v325, %v333
      %vm335 = vcmask 261120
      %336 = vst.msk [vmem:[%s209] sm:$0xff] %vm335, %v334
      %p337 = scmp.lt.s32.totalorder %s18, 1
      %s338 = scalar_select %p337, %s18, 1
      %p339 = scmp.lt.s32.totalorder %s19, 1
      %s340 = scalar_select %p339, %s19, 1
      %p341 = scmp.lt.s32.totalorder %s20, 0
      %s342 = scalar_select %p341, %s20, 0
      %s343 = sadd.s32 %s342, %s340
      %s344 = smul.addr %s338, 2
      %s345 = sadd.s32 %s343, %s344
      %s346 = smul.addr %s345, 8
      %s347 = scalar_lea.vmem %s2, %s346
      // Predicated region
      $region29: #{nlsa_forward.3} parent=27 // pred_check
        %p348 = pneg %p108
      $region30: #{nlsa_forward.3} parent=27 // pred_check_branch
        %350 = sbr.rel (%p348) target = $region32
      $region31: #{nlsa_forward.3} parent=27 // pred_region
        _
      $region32: #{nlsa_forward.3} parent=27 // pred_fallthru
        _
    $region28: #{nlsa_forward.3} parent=5 // pred_fallthru
      _
    %p351 = scmp.le.s32.totalorder 2, %s8
    // Predicated region
    $region33: #{nlsa_forward.3} parent=5 // pred_check
      %p352 = pneg %p351
    $region34: #{nlsa_forward.3} parent=5 // pred_check_branch
      %354 = sbr.rel (%p352) target = $region36
    $region35: #{nlsa_forward.3} parent=5 // pred_region
      %s355 = ssub.s32 %s8, 2
      // Predicated region
      $region37: #{nlsa_forward.3} parent=35 // pred_check
        %p356 = pneg %p114
      $region38: #{nlsa_forward.3} parent=35 // pred_check_branch
        %358 = sbr.rel (%p356) target = $region40
      $region39: #{nlsa_forward.3} parent=35 // pred_region
        %p359 = scmp.lt.s32.totalorder %s21, 1
        %s360 = scalar_select %p359, %s21, 1
        %p361 = scmp.lt.s32.totalorder %s22, 1
        %s362 = scalar_select %p361, %s22, 1
        %p363 = scmp.lt.s32.totalorder %s23, 0
        %s364 = scalar_select %p363, %s23, 0
        %s365 = sadd.s32 %s364, %s362
        %s366 = smul.addr %s360, 2
        %s367 = sadd.s32 %s365, %s366
        %s368 = smul.addr %s367, 8
        %s369 = scalar_lea.vmem %s2, %s368
      $region40: #{nlsa_forward.3} parent=35 // pred_fallthru
        _
    $region36: #{nlsa_forward.3} parent=5 // pred_fallthru
      _
  $region6: #{nlsa_forward.3} parent=0 // loop_footer
    %s12 = sadd.s32 1, %s8
  $region7: #{nlsa_forward.3} parent=0 // loop_footer_branch
    %7 = sbr.rel target = $region3
  $region8: #{nlsa_forward.3} parent=0 // loop_exit
    _

</llo_original>
